<compile_context>
chip_gen: v6e
topology: v6e:2x2x1
jax: 0.10.0
libtpu: 0.0.40
codegen_flags: <defaults>
</compile_context>

<pallas_src>
import jax
import jax.numpy as jnp
from jax.experimental import pallas as pl
from jax.experimental.pallas import tpu as pltpu


def _round_up(n, m):
    return ((n + m - 1) // m) * m


# ---------------------------------------------------------------------------
# Kernel
# ---------------------------------------------------------------------------
def glu_kernel(x_ref, w_ref, b_ref, o_ref):
    dp = o_ref.shape[-1]
    # Fold the input cast into the kernel (saves a separate read+write HBM
    # pass in the wrapper); no-op when x is already in the compute dtype.
    x = x_ref[...].astype(w_ref.dtype)
    # Single fused MXU matmul: (tm, Dp) @ (Dp, 2*Dp) -> (tm, 2*Dp), f32 accum.
    y = jnp.dot(x, w_ref[...], preferred_element_type=jnp.float32)
    y = y + b_ref[...]                        # bias add in f32
    a = y[:, :dp]                             # value half (lane-aligned split)
    g = y[:, dp:]                             # gate half
    o_ref[...] = (a * jax.nn.sigmoid(g)).astype(o_ref.dtype)


# ---------------------------------------------------------------------------
# Parameter packing (one-time)
# ---------------------------------------------------------------------------
def _mxu_lane_target():
    """256 on v6e/v7x (2x256^2 MXU), 128 on older generations / unknown."""
    try:
        kind = jax.devices()[0].device_kind.lower()
    except Exception:
        return 128
    for old in ("v2", "v3", "v4", "v5"):
        if old in kind:
            return 128
    return 256


def _packing(D, lane_target):
    """Return (g, Dp): pack g rows of width D into one Dp-wide lane-dense row."""
    if D % 128 == 0:
        return 1, D                           # already lane dense
    if lane_target % D == 0:
        return lane_target // D, lane_target  # e.g. D=32 -> g=8, Dp=256 on v6e/v7x
    if 128 % D == 0:
        return 128 // D, 128
    # Awkward D: keep g = 1 but zero-pad the feature dim up to a lane multiple
    # so output stores stay fully lane-dense (no vst.msk).
    return 1, _round_up(D, 128)


def prepare_glu_params(weight, bias, *, compute_dtype=jnp.bfloat16,
                       lane_target=None):
    """One-time packing of the PyTorch Linear(D, 2D) params.

    weight: (2D, D) PyTorch layout, bias: (2D,).
    Returns (w_packed (Dp, 2*Dp), b_packed (1, 2*Dp) f32, pack factor g).
    """
    two_d, D = weight.shape
    assert two_d == 2 * D and bias.shape == (2 * D,)
    if lane_target is None:
        lane_target = _mxu_lane_target()
    g, Dp = _packing(D, lane_target)

    wa = weight[:D, :].T                      # (D, D) value half, (in, out)
    wg = weight[D:, :].T                      # (D, D) gate half
    ba = bias[:D]
    bg = bias[D:]

    if g > 1:                                 # block-diagonal kron packing
        eye = jnp.eye(g, dtype=weight.dtype)
        wa = jnp.kron(eye, wa)                # (g*D, g*D)
        wg = jnp.kron(eye, wg)
        ba = jnp.tile(ba, g)
        bg = jnp.tile(bg, g)
    elif Dp != D:                             # lane-pad fallback (awkward D)
        pad = Dp - D
        wa = jnp.pad(wa, ((0, pad), (0, pad)))
        wg = jnp.pad(wg, ((0, pad), (0, pad)))
        ba = jnp.pad(ba, (0, pad))
        bg = jnp.pad(bg, (0, pad))

    w_packed = jnp.concatenate([wa, wg], axis=1).astype(compute_dtype)
    b_packed = jnp.concatenate([ba, bg]).reshape(1, -1).astype(jnp.float32)
    return w_packed, b_packed, g


# ---------------------------------------------------------------------------
# Forward
# ---------------------------------------------------------------------------
def glu_forward_packed(x, w_packed, b_packed, g, *, block_rows=1024,
                       out_dtype=None):
    """x: (B, L, D); w_packed / b_packed / g come from prepare_glu_params()."""
    B, L, D = x.shape
    Dp = w_packed.shape[0]
    assert w_packed.shape == (Dp, 2 * Dp) and b_packed.shape == (1, 2 * Dp)
    d_in = Dp // g                            # per-row feature width seen by the kernel
    out_dtype = x.dtype if out_dtype is None else jnp.dtype(out_dtype)

    M = B * L
    x2d = x.reshape(M, D)
    if d_in != D:                             # lane-pad fallback only (awkward D)
        x2d = jnp.pad(x2d, ((0, 0), (0, d_in - D)))
    m_pack = _round_up(M, g)
    if m_pack != M:                           # rare: M not a multiple of g
        x2d = jnp.pad(x2d, ((0, m_pack - M), (0, 0)))
    rows = m_pack // g
    xp = x2d.reshape(rows, Dp)                # free (contiguous) reshape on hot path

    # Row-tile size: big to amortize per-step overhead; >= 2 grid steps when
    # there is enough work so v7x's two TensorCores both get a share; multiple
    # of 8 so the ragged final tile is layout-legal.
    if rows <= 8:
        tm = rows                             # single full-extent block
    else:
        tm = min(block_rows, _round_up(rows, 8))
        if rows >= 16:
            tm = min(tm, _round_up(pl.cdiv(rows, 2), 8))
        tm = _round_up(tm, 8)
    grid_m = pl.cdiv(rows, tm)

    # VMEM budget: double-buffered x/out tiles + (double-buffered, constant)
    # weight and bias; cap below this generation's physical VMEM (64 MiB/TC on
    # v7x).
    # TODO(synk): mark weight/bias BlockSpecs pipeline_mode=pl.Buffered(1)
    # (constant index_map -> double-buffering them is redundant) once that
    # pipeline mode is confirmed stable on all target generations.
    vmem_est = (2 * tm * Dp * jnp.dtype(x.dtype).itemsize               # x tiles
                + 2 * tm * Dp * out_dtype.itemsize                      # out tiles
                + 2 * Dp * 2 * Dp * jnp.dtype(w_packed.dtype).itemsize  # weight
                + 2 * 2 * Dp * 4)                                       # bias
    try:
        vmem_cap = int(pltpu.get_tpu_info().vmem_capacity_bytes) * 3 // 4
    except Exception:
        vmem_cap = 48 * 1024 * 1024           # safe on every generation
    vmem_limit = int(min(max(2 * vmem_est, 32 * 1024 * 1024), vmem_cap))

    out_packed = pl.pallas_call(
        glu_kernel,
        out_shape=jax.ShapeDtypeStruct((rows, Dp), out_dtype),
        grid_spec=pltpu.PrefetchScalarGridSpec(
            num_scalar_prefetch=0,
            grid=(grid_m,),
            in_specs=[
                pl.BlockSpec((tm, Dp), lambda i: (i, 0)),        # x rows tile
                pl.BlockSpec((Dp, 2 * Dp), lambda i: (0, 0)),    # fused W (resident)
                pl.BlockSpec((1, 2 * Dp), lambda i: (0, 0)),     # fused bias
            ],
            out_specs=pl.BlockSpec((tm, Dp), lambda i: (i, 0)),
        ),
        compiler_params=pltpu.CompilerParams(
            dimension_semantics=("parallel",),
            vmem_limit_bytes=vmem_limit),
    )(xp, w_packed, b_packed)

    out2d = out_packed.reshape(m_pack, d_in)
    if m_pack != M:                           # only if rows were padded (rare)
        out2d = out2d[:M]
    if d_in != D:                             # only in the lane-pad fallback
        out2d = out2d[:, :D]
    return out2d.reshape(B, L, D)


def glu_forward(x, weight, bias, *, compute_dtype=jnp.bfloat16,
                block_rows=1024, out_dtype=None, lane_target=None):
    """Convenience wrapper: packs params per call. For a real model, call
    prepare_glu_params() once and reuse glu_forward_packed()."""
    w_packed, b_packed, g = prepare_glu_params(
        weight, bias, compute_dtype=compute_dtype, lane_target=lane_target)
    return glu_forward_packed(x, w_packed, b_packed, g,
                              block_rows=block_rows, out_dtype=out_dtype)


def glu_reference(x, weight, bias):
    out = jnp.einsum("bld,ed->ble", x, weight) + bias
    D = x.shape[2]
    return out[:, :, :D] * jax.nn.sigmoid(out[:, :, D:])


if __name__ == "__main__":
    B, L, D = 2, 8, 32   # hidden_dim = 32
    key = jax.random.PRNGKey(0)
    kx, kw, kb = jax.random.split(key, 3)

    x = jax.random.normal(kx, (B, L, D), dtype=jnp.float32)
    # Deterministic PyTorch-style init: U(-1/sqrt(D), 1/sqrt(D)).
    bound = 1.0 / (D ** 0.5)
    weight = jax.random.uniform(kw, (2 * D, D), minval=-bound, maxval=bound,
                                dtype=jnp.float32)
    bias = jax.random.uniform(kb, (2 * D,), minval=-bound, maxval=bound,
                              dtype=jnp.float32)

    ref = glu_reference(x, weight, bias)

    # Exact-precision path (f32 operands): matches the PyTorch module numerics.
    out_f32 = glu_forward(x, weight, bias, compute_dtype=jnp.float32)
    jax.block_until_ready(out_f32)
    assert out_f32.shape == (B, L, D)
    assert jnp.allclose(out_f32, ref, atol=1e-5, rtol=1e-5)

    # Fast (default) path: bf16 MXU operands, f32 accumulation, f32 output.
    out_fast = glu_forward(x, weight, bias)
    jax.block_until_ready(out_fast)
    assert out_fast.shape == (B, L, D)
    assert jnp.allclose(out_fast, ref, atol=5e-2, rtol=5e-2)

    # Bandwidth-lean path: bf16 operands AND bf16 output (~2x fewer output
    # HBM bytes at the memory-bound roofline).
    out_lean = glu_forward(x, weight, bias, out_dtype=jnp.bfloat16)
    jax.block_until_ready(out_lean)
    assert out_lean.shape == (B, L, D) and out_lean.dtype == jnp.bfloat16
    assert jnp.allclose(out_lean.astype(jnp.float32), ref, atol=1e-1, rtol=1e-1)

    print("KERNEL_OK")
</pallas_src>

<mosaic_0001>
module attributes {stable_mosaic.version = 11 : i64} {
  func.func @glu_kernel(%arg0: i32, %arg1: memref<2x256xf32, #tpu.memory_space<vmem>>, %arg2: memref<256x512xf32, #tpu.memory_space<vmem>>, %arg3: memref<1x512xf32, #tpu.memory_space<vmem>>, %arg4: memref<2x256xf32, #tpu.memory_space<vmem>>) attributes {dimension_semantics = [#tpu.dimension_semantics<parallel>], iteration_bounds = array<i64: 1>, scalar_prefetch = 0 : i64, scratch_operands = 0 : i64, tpu.core_type = #tpu.core_type<tc>, window_params = [{transform_indices = @transform_0, window_bounds = array<i64: 2, 256>}, {pipeline_mode = #tpu.pipeline_mode<synchronous>, transform_indices = @transform_1, window_bounds = array<i64: 256, 512>}, {pipeline_mode = #tpu.pipeline_mode<synchronous>, transform_indices = @transform_2, window_bounds = array<i64: 1, 512>}, {transform_indices = @transform_3, window_bounds = array<i64: 2, 256>}]} {
    %c0 = arith.constant 0 : index
    %c0_0 = arith.constant 0 : index
    %0 = vector.load %arg1[%c0, %c0_0] : memref<2x256xf32, #tpu.memory_space<vmem>>, vector<2x256xf32>
    %c0_1 = arith.constant 0 : index
    %c0_2 = arith.constant 0 : index
    %1 = vector.load %arg2[%c0_1, %c0_2] : memref<256x512xf32, #tpu.memory_space<vmem>>, vector<256x512xf32>
    %cst = arith.constant dense<0.000000e+00> : vector<2x512xf32>
    %2 = tpu.matmul %0, %1, %cst {dimension_numbers = #tpu.dot_dimension_numbers<[1], [0], [0], [1], [0, 0, 1, 1], [], []>} : vector<2x256xf32>, vector<256x512xf32>, vector<2x512xf32> -> vector<2x512xf32>
    %c0_3 = arith.constant 0 : index
    %c0_4 = arith.constant 0 : index
    %3 = vector.load %arg3[%c0_3, %c0_4] : memref<1x512xf32, #tpu.memory_space<vmem>>, vector<1x512xf32>
    %4 = vector.broadcast %3 : vector<1x512xf32> to vector<2x512xf32>
    %5 = arith.addf %2, %4 : vector<2x512xf32>
    %6 = vector.extract_strided_slice %5 {offsets = [0, 0], sizes = [2, 256], strides = [1, 1]} : vector<2x512xf32> to vector<2x256xf32>
    %7 = vector.extract_strided_slice %5 {offsets = [0, 256], sizes = [2, 256], strides = [1, 1]} : vector<2x512xf32> to vector<2x256xf32>
    %8 = arith.negf %7 : vector<2x256xf32>
    %9 = math.exp %8 : vector<2x256xf32>
    %cst_5 = arith.constant 1.000000e+00 : f32
    %10 = vector.broadcast %cst_5 : f32 to vector<2x256xf32>
    %11 = arith.addf %10, %9 : vector<2x256xf32>
    %12 = arith.divf %10, %11 : vector<2x256xf32>
    %13 = arith.mulf %6, %12 : vector<2x256xf32>
    %c0_6 = arith.constant 0 : index
    %c0_7 = arith.constant 0 : index
    %14 = vector.load %arg4[%c0_6, %c0_7] : memref<2x256xf32, #tpu.memory_space<vmem>>, vector<2x256xf32>
    tpu.vector_store %arg4[%c0_6, %c0_7], %13 {strides = array<i32>} : memref<2x256xf32, #tpu.memory_space<vmem>>, vector<2x256xf32>,
    return
  }
  func.func @transform_0(%arg0: i32) -> (i32, i32) {
    %c0_i32 = arith.constant 0 : i32
    %c0_i32_0 = arith.constant 0 : i32
    return %arg0, %c0_i32 : i32, i32
  }
  func.func @transform_1(%arg0: i32) -> (i32, i32) {
    %c0_i32 = arith.constant 0 : i32
    %c0_i32_0 = arith.constant 0 : i32
    %c0_i32_1 = arith.constant 0 : i32
    return %c0_i32, %c0_i32_0 : i32, i32
  }
  func.func @transform_2(%arg0: i32) -> (i32, i32) {
    %c0_i32 = arith.constant 0 : i32
    %c0_i32_0 = arith.constant 0 : i32
    %c0_i32_1 = arith.constant 0 : i32
    return %c0_i32, %c0_i32_0 : i32, i32
  }
  func.func @transform_3(%arg0: i32) -> (i32, i32) {
    %c0_i32 = arith.constant 0 : i32
    %c0_i32_0 = arith.constant 0 : i32
    return %arg0, %c0_i32 : i32, i32
  }
}

</mosaic_0001>

<llo_original>
// kernel: tpu_custom_call.1
$region0: #{tpu_custom_call.1}
  #allocation0 [shape = 'u32[]', space=smem, size = 0x4, offset = 0x4, fixed_abs, tag = 'smem constant byte address 0x4 - core index']
  #allocation1 [shape = 'u32[144,128]{1,0:T(1,128)}', space=vmem, size = 0x12000, scoped, tag = 'internal scratch']
  %s0 = inlined_call_operand.hbm [shape: f32[2,256], index: 0, kind: input, shape index: {}]
  %s1 = inlined_call_operand.hbm [shape: f32[256,512], index: 1, kind: input, shape index: {}]
  %s2 = inlined_call_operand.hbm [shape: f32[1,512], index: 2, kind: input, shape index: {}]
  %s3 = inlined_call_operand.hbm [shape: f32[2,256], index: 3, kind: output, shape index: {}]
  %s4 = sld [smem:[#allocation0]]
  $region34: #{tpu_custom_call.1} parent=0
    _
  %s6 = ssub.s32 1, %s4
  %s7 = scalar_select 0, %s6, %s4
  $region1: #{tpu_custom_call.1} parent=0
    #allocation2 [shape = 'u8[2048]{0}', space=vmem, size = 0x800, scoped, tag = 'input window, operand 0, single buffered']
    #allocation3 [shape = 's32[1]{0}', space=sflag, size = 0x4, scoped, tag = 'scoped memory for tpu_custom_call.1']
    #allocation4 [shape = 's32[1]{0}', space=sflag, size = 0x4, scoped, tag = 'scoped memory for tpu_custom_call.1']
    #allocation5 [shape = 'u8[524288]{0}', space=vmem, size = 0x80000, scoped, tag = 'input window, operand 1, single buffered']
    #allocation6 [shape = 's32[1]{0}', space=sflag, size = 0x4, scoped, tag = 'scoped memory for tpu_custom_call.1']
    #allocation7 [shape = 'u8[2048]{0}', space=vmem, size = 0x800, scoped, tag = 'input window, operand 2, single buffered']
    #allocation8 [shape = 'u8[2048]{0}', space=vmem, size = 0x800, scoped, tag = 'output window, operand 0, single buffered']
    %8 = vsyncpa [#allocation3], 0
    %9 = vsyncpa [#allocation6], 0
    %10 = vsyncpa [#allocation4], 0
    // Predicated region
    $region2: #{tpu_custom_call.1} parent=1 // pred_check
      _
    $region3: #{tpu_custom_call.1} parent=1 // pred_check_branch
      %12 = sbr.rel (0) target = $region5
    $region4: #{tpu_custom_call.1} parent=1 // pred_region
      %s14 = ssub.s32 64, 64
      %15 = vsyncadd [#allocation3], %s14
      %s17 = sshll.u32 [#allocation2], 4
      %s18 = int_to_ptr.vmem [resolvable:$true] %s17
      %20 = dma.hbm_to_vmem [thread:$0]  %s0, 64, %s18, [#allocation3]
    $region5: #{tpu_custom_call.1} parent=1 // pred_fallthru
      _
    // Predicated region
    $region6: #{tpu_custom_call.1} parent=1 // pred_check
      _
    $region7: #{tpu_custom_call.1} parent=1 // pred_check_branch
      %22 = sbr.rel (0) target = $region9
    $region8: #{tpu_custom_call.1} parent=1 // pred_region
      %s24 = ssub.s32 16384, 16384
      %25 = vsyncadd [#allocation6], %s24
      %s26 = sshll.u32 [#allocation5], 4
      %s27 = int_to_ptr.vmem [resolvable:$true] %s26
      %32 = dma.hbm_to_vmem [thread:$0]  %s1, 16384, %s27, [#allocation6], 512, 512, 32
    $region9: #{tpu_custom_call.1} parent=1 // pred_fallthru
      _
    // Predicated region
    $region10: #{tpu_custom_call.1} parent=1 // pred_check
      _
    $region11: #{tpu_custom_call.1} parent=1 // pred_check_branch
      %34 = sbr.rel (0) target = $region13
    $region12: #{tpu_custom_call.1} parent=1 // pred_region
      %s36 = ssub.s32 64, 64
      %37 = vsyncadd [#allocation6], %s36
      %s39 = sshll.u32 [#allocation7], 4
      %s40 = int_to_ptr.vmem [resolvable:$true] %s39
      %42 = dma.hbm_to_vmem [thread:$0]  %s2, 64, %s40, [#allocation6]
    $region13: #{tpu_custom_call.1} parent=1 // pred_fallthru
      _
    // Predicated region
    $region14: #{tpu_custom_call.1} parent=1 // pred_check
      _
    $region15: #{tpu_custom_call.1} parent=1 // pred_check_branch
      %44 = sbr.rel (0) target = $region17
    $region16: #{tpu_custom_call.1} parent=1 // pred_region
      %45 = dma.done [#allocation3], 64
    $region17: #{tpu_custom_call.1} parent=1 // pred_fallthru
      _
    // Predicated region
    $region18: #{tpu_custom_call.1} parent=1 // pred_check
      _
    $region19: #{tpu_custom_call.1} parent=1 // pred_check_branch
      %47 = sbr.rel (0) target = $region21
    $region20: #{tpu_custom_call.1} parent=1 // pred_region
      %48 = dma.done [#allocation6], 16384
    $region21: #{tpu_custom_call.1} parent=1 // pred_fallthru
      _
    // Predicated region
    $region22: #{tpu_custom_call.1} parent=1 // pred_check
      _
    $region23: #{tpu_custom_call.1} parent=1 // pred_check_branch
      %50 = sbr.rel (0) target = $region25
    $region24: #{tpu_custom_call.1} parent=1 // pred_region
      %51 = dma.done [#allocation6], 64
    $region25: #{tpu_custom_call.1} parent=1 // pred_fallthru
      _
    %v52 = vld [vmem:[#allocation2] sm:$0xf]
    %v53 = vld [vmem:[#allocation5] sm:$0xff]
    %v54 = vld [vmem:[#allocation5 + $0x8] sm:$0xff]
    %v55 = vld [vmem:[#allocation5 + $0x10] sm:$0xff]
    %v56 = vld [vmem:[#allocation5 + $0x18] sm:$0xff]
    %v57 = vld [vmem:[#allocation5 + $0x20] sm:$0xff]
    %v58 = vld [vmem:[#allocation5 + $0x28] sm:$0xff]
    %v59 = vld [vmem:[#allocation5 + $0x30] sm:$0xff]
    %v60 = vld [vmem:[#allocation5 + $0x38] sm:$0xff]
    %v61 = vld [vmem:[#allocation5 + $0x40] sm:$0xff]
    %v62 = vld [vmem:[#allocation5 + $0x48] sm:$0xff]
    %v63 = vld [vmem:[#allocation5 + $0x50] sm:$0xff]
    %v64 = vld [vmem:[#allocation5 + $0x58] sm:$0xff]
    %v65 = vld [vmem:[#allocation5 + $0x60] sm:$0xff]
    %v66 = vld [vmem:[#allocation5 + $0x68] sm:$0xff]
    %v67 = vld [vmem:[#allocation5 + $0x70] sm:$0xff]
    %v68 = vld [vmem:[#allocation5 + $0x78] sm:$0xff]
    %v69 = vld [vmem:[#allocation5 + $0x80] sm:$0xff]
    %v70 = vld [vmem:[#allocation5 + $0x88] sm:$0xff]
    %v71 = vld [vmem:[#allocation5 + $0x90] sm:$0xff]
    %v72 = vld [vmem:[#allocation5 + $0x98] sm:$0xff]
    %v73 = vld [vmem:[#allocation5 + $0xa0] sm:$0xff]
    %v74 = vld [vmem:[#allocation5 + $0xa8] sm:$0xff]
    %v75 = vld [vmem:[#allocation5 + $0xb0] sm:$0xff]
    %v76 = vld [vmem:[#allocation5 + $0xb8] sm:$0xff]
    %v77 = vld [vmem:[#allocation5 + $0xc0] sm:$0xff]
    %v78 = vld [vmem:[#allocation5 + $0xc8] sm:$0xff]
    %v79 = vld [vmem:[#allocation5 + $0xd0] sm:$0xff]
    %v80 = vld [vmem:[#allocation5 + $0xd8] sm:$0xff]
    %v81 = vld [vmem:[#allocation5 + $0xe0] sm:$0xff]
    %v82 = vld [vmem:[#allocation5 + $0xe8] sm:$0xff]
    %v83 = vld [vmem:[#allocation5 + $0xf0] sm:$0xff]
    %v84 = vld [vmem:[#allocation5 + $0xf8] sm:$0xff]
    %v85 = vld [vmem:[#allocation5 + $0x100] sm:$0xff]
    %v86 = vld [vmem:[#allocation5 + $0x108] sm:$0xff]
    %v87 = vld [vmem:[#allocation5 + $0x110] sm:$0xff]
    %v88 = vld [vmem:[#allocation5 + $0x118] sm:$0xff]
    %v89 = vld [vmem:[#allocation5 + $0x120] sm:$0xff]
    %v90 = vld [vmem:[#allocation5 + $0x128] sm:$0xff]
    %v91 = vld [vmem:[#allocation5 + $0x130] sm:$0xff]
    %v92 = vld [vmem:[#allocation5 + $0x138] sm:$0xff]
    %v93 = vld [vmem:[#allocation5 + $0x140] sm:$0xff]
    %v94 = vld [vmem:[#allocation5 + $0x148] sm:$0xff]
    %v95 = vld [vmem:[#allocation5 + $0x150] sm:$0xff]
    %v96 = vld [vmem:[#allocation5 + $0x158] sm:$0xff]
    %v97 = vld [vmem:[#allocation5 + $0x160] sm:$0xff]
    %v98 = vld [vmem:[#allocation5 + $0x168] sm:$0xff]
    %v99 = vld [vmem:[#allocation5 + $0x170] sm:$0xff]
    %v100 = vld [vmem:[#allocation5 + $0x178] sm:$0xff]
    %v101 = vld [vmem:[#allocation5 + $0x180] sm:$0xff]
    %v102 = vld [vmem:[#allocation5 + $0x188] sm:$0xff]
    %v103 = vld [vmem:[#allocation5 + $0x190] sm:$0xff]
    %v104 = vld [vmem:[#allocation5 + $0x198] sm:$0xff]
    %v105 = vld [vmem:[#allocation5 + $0x1a0] sm:$0xff]
    %v106 = vld [vmem:[#allocation5 + $0x1a8] sm:$0xff]
    %v107 = vld [vmem:[#allocation5 + $0x1b0] sm:$0xff]
    %v108 = vld [vmem:[#allocation5 + $0x1b8] sm:$0xff]
    %v109 = vld [vmem:[#allocation5 + $0x1c0] sm:$0xff]
    %v110 = vld [vmem:[#allocation5 + $0x1c8] sm:$0xff]
    %v111 = vld [vmem:[#allocation5 + $0x1d0] sm:$0xff]
    %v112 = vld [vmem:[#allocation5 + $0x1d8] sm:$0xff]
    %v113 = vld [vmem:[#allocation5 + $0x1e0] sm:$0xff]
    %v114 = vld [vmem:[#allocation5 + $0x1e8] sm:$0xff]
    %v115 = vld [vmem:[#allocation5 + $0x1f0] sm:$0xff]
    %v116 = vld [vmem:[#allocation5 + $0x1f8] sm:$0xff]
    %v117 = vld [vmem:[#allocation5 + $0x200] sm:$0xff]
    %v118 = vld [vmem:[#allocation5 + $0x208] sm:$0xff]
    %v119 = vld [vmem:[#allocation5 + $0x210] sm:$0xff]
    %v120 = vld [vmem:[#allocation5 + $0x218] sm:$0xff]
    %v121 = vld [vmem:[#allocation5 + $0x220] sm:$0xff]
    %v122 = vld [vmem:[#allocation5 + $0x228] sm:$0xff]
    %v123 = vld [vmem:[#allocation5 + $0x230] sm:$0xff]
    %v124 = vld [vmem:[#allocation5 + $0x238] sm:$0xff]
    %v125 = vld [vmem:[#allocation5 + $0x240] sm:$0xff]
    %v126 = vld [vmem:[#allocation5 + $0x248] sm:$0xff]
    %v127 = vld [vmem:[#allocation5 + $0x250] sm:$0xff]
    %v128 = vld [vmem:[#allocation5 + $0x258] sm:$0xff]
    %v129 = vld [vmem:[#allocation5 + $0x260] sm:$0xff]
    %v130 = vld [vmem:[#allocation5 + $0x268] sm:$0xff]
    %v131 = vld [vmem:[#allocation5 + $0x270] sm:$0xff]
    %v132 = vld [vmem:[#allocation5 + $0x278] sm:$0xff]
    %v133 = vld [vmem:[#allocation5 + $0x280] sm:$0xff]
    %v134 = vld [vmem:[#allocation5 + $0x288] sm:$0xff]
    %v135 = vld [vmem:[#allocation5 + $0x290] sm:$0xff]
    %v136 = vld [vmem:[#allocation5 + $0x298] sm:$0xff]
    %v137 = vld [vmem:[#allocation5 + $0x2a0] sm:$0xff]
    %v138 = vld [vmem:[#allocation5 + $0x2a8] sm:$0xff]
    %v139 = vld [vmem:[#allocation5 + $0x2b0] sm:$0xff]
    %v140 = vld [vmem:[#allocation5 + $0x2b8] sm:$0xff]
    %v141 = vld [vmem:[#allocation5 + $0x2c0] sm:$0xff]
    %v142 = vld [vmem:[#allocation5 + $0x2c8] sm:$0xff]
    %v143 = vld [vmem:[#allocation5 + $0x2d0] sm:$0xff]
    %v144 = vld [vmem:[#allocation5 + $0x2d8] sm:$0xff]
    %v145 = vld [vmem:[#allocation5 + $0x2e0] sm:$0xff]
    %v146 = vld [vmem:[#allocation5 + $0x2e8] sm:$0xff]
    %v147 = vld [vmem:[#allocation5 + $0x2f0] sm:$0xff]
    %v148 = vld [vmem:[#allocation5 + $0x2f8] sm:$0xff]
    %v149 = vld [vmem:[#allocation5 + $0x300] sm:$0xff]
    %v150 = vld [vmem:[#allocation5 + $0x308] sm:$0xff]
    %v151 = vld [vmem:[#allocation5 + $0x310] sm:$0xff]
    %v152 = vld [vmem:[#allocation5 + $0x318] sm:$0xff]
    %v153 = vld [vmem:[#allocation5 + $0x320] sm:$0xff]
    %v154 = vld [vmem:[#allocation5 + $0x328] sm:$0xff]
    %v155 = vld [vmem:[#allocation5 + $0x330] sm:$0xff]
    %v156 = vld [vmem:[#allocation5 + $0x338] sm:$0xff]
    %v157 = vld [vmem:[#allocation5 + $0x340] sm:$0xff]
    %v158 = vld [vmem:[#allocation5 + $0x348] sm:$0xff]
    %v159 = vld [vmem:[#allocation5 + $0x350] sm:$0xff]
    %v160 = vld [vmem:[#allocation5 + $0x358] sm:$0xff]
    %v161 = vld [vmem:[#allocation5 + $0x360] sm:$0xff]
    %v162 = vld [vmem:[#allocation5 + $0x368] sm:$0xff]
    %v163 = vld [vmem:[#allocation5 + $0x370] sm:$0xff]
    %v164 = vld [vmem:[#allocation5 + $0x378] sm:$0xff]
    %v165 = vld [vmem:[#allocation5 + $0x380] sm:$0xff]
    %v166 = vld [vmem:[#allocation5 + $0x388] sm:$0xff]
    %v167 = vld [vmem:[#allocation5 + $0x390] sm:$0xff]
    %v168 = vld [vmem:[#allocation5 + $0x398] sm:$0xff]
    %v169 = vld [vmem:[#allocation5 + $0x3a0] sm:$0xff]
    %v170 = vld [vmem:[#allocation5 + $0x3a8] sm:$0xff]
    %v171 = vld [vmem:[#allocation5 + $0x3b0] sm:$0xff]
    %v172 = vld [vmem:[#allocation5 + $0x3b8] sm:$0xff]
    %v173 = vld [vmem:[#allocation5 + $0x3c0] sm:$0xff]
    %v174 = vld [vmem:[#allocation5 + $0x3c8] sm:$0xff]
    %v175 = vld [vmem:[#allocation5 + $0x3d0] sm:$0xff]
    %v176 = vld [vmem:[#allocation5 + $0x3d8] sm:$0xff]
    %v177 = vld [vmem:[#allocation5 + $0x3e0] sm:$0xff]
    %v178 = vld [vmem:[#allocation5 + $0x3e8] sm:$0xff]
    %v179 = vld [vmem:[#allocation5 + $0x3f0] sm:$0xff]
    %v180 = vld [vmem:[#allocation5 + $0x3f8] sm:$0xff]
    %v181 = vld [vmem:[#allocation7] sm:$0xf]
    %v183 = vlaneseq
    %v184 = vshrl.u32 %v183, 7
    %v185 = vsub.s32 0, %v184
    %v186 = vrot.slane %v181, %v185
    %v187 = vlaneseq
    %v188 = vshrl.u32 %v187, 7
    %v189 = vsub.s32 1, %v188
    %v190 = vrot.slane %v181, %v189
    %v191 = vlaneseq
    %v192 = vshrl.u32 %v191, 7
    %v193 = vsub.s32 2, %v192
    %v194 = vrot.slane %v181, %v193
    %v195 = vlaneseq
    %v196 = vshrl.u32 %v195, 7
    %v197 = vsub.s32 3, %v196
    %v198 = vrot.slane %v181, %v197
    %v205 = vunpack.c.l.s4 1983009808
    %v206 = vunpack.c.0.s8 %v205
    %v207 = vlaneseq
    %v208 = vshrl.u32 %v207, 7
    %v209 = vsub.s32 %v206, %v208
    %v210 = vrot.slane %v52, %v209
    %v211 = vcombine.high %v210, %v210
    %214 = vmatprep.subr.mxu0 %v114
    %215 = vmatpush1.msra.mxu0 %v113
    %216 = vmatprep.subr.mxu0 %v110
    %217 = vmatpush1.msra.mxu0 %v109
    %218 = vmatprep.subr.mxu0 %v106
    %219 = vmatpush1.msra.mxu0 %v105
    %220 = vmatprep.subr.mxu0 %v102
    %221 = vmatpush1.msra.mxu0 %v101
    %222 = vmatprep.subr.mxu0 %v98
    %223 = vmatpush1.msra.mxu0 %v97
    %224 = vmatprep.subr.mxu0 %v94
    %225 = vmatpush1.msra.mxu0 %v93
    %226 = vmatprep.subr.mxu0 %v90
    %227 = vmatpush1.msra.mxu0 %v89
    %228 = vmatprep.subr.mxu0 %v86
    %229 = vmatpush1.msra.mxu0 %v85
    %230 = vmatprep.subr.mxu0 %v82
    %231 = vmatpush1.msra.mxu0 %v81
    %232 = vmatprep.subr.mxu0 %v78
    %233 = vmatpush1.msra.mxu0 %v77
    %234 = vmatprep.subr.mxu0 %v74
    %235 = vmatpush1.msra.mxu0 %v73
    %236 = vmatprep.subr.mxu0 %v70
    %237 = vmatpush1.msra.mxu0 %v69
    %238 = vmatprep.subr.mxu0 %v66
    %239 = vmatpush1.msra.mxu0 %v65
    %240 = vmatprep.subr.mxu0 %v62
    %241 = vmatpush1.msra.mxu0 %v61
    %242 = vmatprep.subr.mxu0 %v58
    %243 = vmatpush1.msra.mxu0 %v57
    %244 = vmatprep.subr.mxu0 %v54
    %245 = vmatpush1.msra.mxu0 %v53
    %246 = vmatprep.subr.mxu0 %v178
    %247 = vmatpush2.msra.mxu0 %v177
    %248 = vmatprep.subr.mxu0 %v174
    %249 = vmatpush2.msra.mxu0 %v173
    %250 = vmatprep.subr.mxu0 %v170
    %251 = vmatpush2.msra.mxu0 %v169
    %252 = vmatprep.subr.mxu0 %v166
    %253 = vmatpush2.msra.mxu0 %v165
    %254 = vmatprep.subr.mxu0 %v162
    %255 = vmatpush2.msra.mxu0 %v161
    %256 = vmatprep.subr.mxu0 %v158
    %257 = vmatpush2.msra.mxu0 %v157
    %258 = vmatprep.subr.mxu0 %v154
    %259 = vmatpush2.msra.mxu0 %v153
    %260 = vmatprep.subr.mxu0 %v150
    %261 = vmatpush2.msra.mxu0 %v149
    %262 = vmatprep.subr.mxu0 %v146
    %263 = vmatpush2.msra.mxu0 %v145
    %264 = vmatprep.subr.mxu0 %v142
    %265 = vmatpush2.msra.mxu0 %v141
    %266 = vmatprep.subr.mxu0 %v138
    %267 = vmatpush2.msra.mxu0 %v137
    %268 = vmatprep.subr.mxu0 %v134
    %269 = vmatpush2.msra.mxu0 %v133
    %270 = vmatprep.subr.mxu0 %v130
    %271 = vmatpush2.msra.mxu0 %v129
    %272 = vmatprep.subr.mxu0 %v126
    %273 = vmatpush2.msra.mxu0 %v125
    %274 = vmatprep.subr.mxu0 %v122
    %275 = vmatpush2.msra.mxu0 %v121
    %276 = vmatprep.subr.mxu0 %v118
    %277 = vmatpush2.msra.mxu0 %v117
    %278 = vmatprep.mubr.f32.mxu0 %v211
    %279 = vmatmul.mubr.f32.gmra.mxu0 %v210
    %v280 = vpop.f32.mrf.mxu0
    %v281 = vadd.f32 %v186, %v280
    %v282 = vpop.f32.mrf.mxu0
    %v283 = vadd.f32 %v190, %v282
    %284 = vdwg.mxu0
    %285 = vmatprep.subr.mxu0 %v116
    %286 = vmatpush1.msra.mxu0 %v115
    %287 = vmatprep.subr.mxu0 %v112
    %288 = vmatpush1.msra.mxu0 %v111
    %289 = vmatprep.subr.mxu0 %v108
    %290 = vmatpush1.msra.mxu0 %v107
    %291 = vmatprep.subr.mxu0 %v104
    %292 = vmatpush1.msra.mxu0 %v103
    %293 = vmatprep.subr.mxu0 %v100
    %294 = vmatpush1.msra.mxu0 %v99
    %295 = vmatprep.subr.mxu0 %v96
    %296 = vmatpush1.msra.mxu0 %v95
    %297 = vmatprep.subr.mxu0 %v92
    %298 = vmatpush1.msra.mxu0 %v91
    %299 = vmatprep.subr.mxu0 %v88
    %300 = vmatpush1.msra.mxu0 %v87
    %301 = vmatprep.subr.mxu0 %v84
    %302 = vmatpush1.msra.mxu0 %v83
    %303 = vmatprep.subr.mxu0 %v80
    %304 = vmatpush1.msra.mxu0 %v79
    %305 = vmatprep.subr.mxu0 %v76
    %306 = vmatpush1.msra.mxu0 %v75
    %307 = vmatprep.subr.mxu0 %v72
    %308 = vmatpush1.msra.mxu0 %v71
    %309 = vmatprep.subr.mxu0 %v68
    %310 = vmatpush1.msra.mxu0 %v67
    %311 = vmatprep.subr.mxu0 %v64
    %312 = vmatpush1.msra.mxu0 %v63
    %313 = vmatprep.subr.mxu0 %v60
    %314 = vmatpush1.msra.mxu0 %v59
    %315 = vmatprep.subr.mxu0 %v56
    %316 = vmatpush1.msra.mxu0 %v55
    %317 = vmatprep.subr.mxu0 %v180
    %318 = vmatpush2.msra.mxu0 %v179
    %319 = vmatprep.subr.mxu0 %v176
    %320 = vmatpush2.msra.mxu0 %v175
    %321 = vmatprep.subr.mxu0 %v172
    %322 = vmatpush2.msra.mxu0 %v171
    %323 = vmatprep.subr.mxu0 %v168
    %324 = vmatpush2.msra.mxu0 %v167
    %325 = vmatprep.subr.mxu0 %v164
    %326 = vmatpush2.msra.mxu0 %v163
    %327 = vmatprep.subr.mxu0 %v160
    %328 = vmatpush2.msra.mxu0 %v159
    %329 = vmatprep.subr.mxu0 %v156
    %330 = vmatpush2.msra.mxu0 %v155
    %331 = vmatprep.subr.mxu0 %v152
    %332 = vmatpush2.msra.mxu0 %v151
    %333 = vmatprep.subr.mxu0 %v148
    %334 = vmatpush2.msra.mxu0 %v147
    %335 = vmatprep.subr.mxu0 %v144
    %336 = vmatpush2.msra.mxu0 %v143
    %337 = vmatprep.subr.mxu0 %v140
    %338 = vmatpush2.msra.mxu0 %v139
    %339 = vmatprep.subr.mxu0 %v136
    %340 = vmatpush2.msra.mxu0 %v135
    %341 = vmatprep.subr.mxu0 %v132
    %342 = vmatpush2.msra.mxu0 %v131
    %343 = vmatprep.subr.mxu0 %v128
    %344 = vmatpush2.msra.mxu0 %v127
    %345 = vmatprep.subr.mxu0 %v124
    %346 = vmatpush2.msra.mxu0 %v123
    %347 = vmatprep.subr.mxu0 %v120
    %348 = vmatpush2.msra.mxu0 %v119
    %349 = vmatprep.mubr.f32.mxu0 %v211
    %350 = vmatmul.mubr.f32.gmra.mxu0 %v210
    %v351 = vpop.f32.mrf.mxu0
    %v352 = vadd.f32 %v194, %v351
    %v353 = vpop.f32.mrf.mxu0
    %v354 = vadd.f32 %v198, %v353
    %355 = vdwg.mxu0
    %v356 = vxor.u32 %v352, 2147483648
    %v357 = vxor.u32 %v354, 2147483648
    %v358 = vmul.f32 %v356, 1.442695
    %v359 = vpow.pop %v358
    %v360 = vmul.f32 %v357, 1.442695
    %v361 = vpow.pop %v360
    %v362 = vadd.f32 %v359, 1.0
    %v363 = vadd.f32 %v361, 1.0
    %v364 = vrcp.pop %v362
    %v365 = vmul.f32 1.0, %v364
    %v366 = vrcp.pop %v363
    %v367 = vmul.f32 1.0, %v366
    %v368 = vmul.f32 %v281, %v365
    %v369 = vmul.f32 %v283, %v367
    %v372 = vcombine.low %v368, %v369
    %v374 = vunpack.c.l.s4 1983009808
    %v375 = vunpack.c.0.s8 %v374
    %v376 = vlaneseq
    %v377 = vshrl.u32 %v376, 7
    %v378 = vsub.s32 %v375, %v377
    %v379 = vrot.slane %v372, %v378
    %381 = vst [vmem:[#allocation8] sm:$0xf] %v379
    // Predicated region
    $region26: #{tpu_custom_call.1} parent=1 // pred_check
      _
    $region27: #{tpu_custom_call.1} parent=1 // pred_check_branch
      %383 = sbr.rel (0) target = $region29
    $region28: #{tpu_custom_call.1} parent=1 // pred_region
      %s385 = ssub.s32 64, 64
      %386 = vsyncadd [#allocation4], %s385
      %s388 = sshll.u32 [#allocation8], 4
      %s389 = int_to_ptr.vmem [resolvable:$true] %s388
      %391 = dma.vmem_to_hbm [thread:$0]  %s389, 64, %s3, [#allocation4]
    $region29: #{tpu_custom_call.1} parent=1 // pred_fallthru
      _
    // Predicated region
    $region30: #{tpu_custom_call.1} parent=1 // pred_check
      _
    $region31: #{tpu_custom_call.1} parent=1 // pred_check_branch
      %393 = sbr.rel (0) target = $region33
    $region32: #{tpu_custom_call.1} parent=1 // pred_region
      %394 = dma.done [#allocation4], 64
    $region33: #{tpu_custom_call.1} parent=1 // pred_fallthru
      _
    %395 = vsyncpa [#allocation3], 1
    %396 = vsyncpa [#allocation6], 1
    %397 = vsyncpa [#allocation4], 1

</llo_original>
